<compile_context>
chip_gen: v6e
topology: v6e:2x2x1
jax: 0.10.0
libtpu: 0.0.40
codegen_flags: <defaults>
</compile_context>

<pallas_src>
import jax
import jax.numpy as jnp
from jax import lax
from jax.experimental import pallas as pl
from jax.experimental.pallas import tpu as pltpu


def _round_up(v, m):
    return (v + m - 1) // m * m


def _poly_kernel(x_ref, w_ref, b_ref, o_ref):
    # x_ref: (TILE_ROWS, Dp) VMEM, native dtype (f32/bf16), lane-dense rows
    # w_ref: (K, Dp)         VMEM, lane-dense row-form weight, resident across grid steps
    # b_ref: (1,)            SMEM scalar bias
    # o_ref: (K, TILE_ROWS)  VMEM, lane-dense output (batch rows on the lane axis)
    z = lax.dot_general(
        w_ref[...], x_ref[...],
        dimension_numbers=(((1,), (1,)), ((), ())),   # contract the lane (feature) axis on the MXU
        preferred_element_type=jnp.float32,           # f32 accumulation, no input astype
    )                                                 # (K, TILE_ROWS)
    z = z + b_ref[0]                                  # scalar bias from SMEM
    o_ref[...] = jax.nn.sigmoid(z).astype(o_ref.dtype)   # EUP transcendental, 128-lane dense


def _vmem_capacity_bytes():
    """Physical VMEM of the current TPU generation (fallback: v7x per-core 64 MiB)."""
    try:
        cap = getattr(pltpu.get_tpu_info(), "vmem_capacity_bytes", None)
        if cap:
            return int(cap)
    except Exception:
        pass
    return 64 * 1024 * 1024


def _choose_tile_rows(bp, dp, x_itemsize, out_itemsize, phys_vmem):
    """Largest packed-row tile whose double-buffered x + out footprint fits ~55% of VMEM
    (~70 MiB on v5e/v6e, ~35 MiB on v7x), lane-padding aware, multiple of 128 rows."""
    budget = int(phys_vmem * 0.55)
    per_row = 2 * (_round_up(dp, 128) * x_itemsize           # x tile, lane-padded, double-buffered
                   + _round_up(1, 8) * 8 * out_itemsize)     # out tile: 8 sublanes x 1 lane per row
    max_rows = budget // per_row
    max_rows = max(128, (max_rows // 128) * 128)
    if bp <= max_rows:
        return bp                      # single full-extent block
    return max_rows


def polynomial_model_forward(x, weight, bias, *, tile_rows=None):
    """x: (B, D); weight: (1, D); bias: (1,) -> sigmoid(x @ W.T + b).squeeze()."""
    B, D = x.shape
    dtype = x.dtype
    itemsize = jnp.dtype(dtype).itemsize

    # Lane packing: fold k = 128 // D consecutive batch rows into one 128-lane row so
    # input loads, the MXU contraction, the epilogue and the stores are lane-dense.
    k = 128 // D if (D < 128 and 128 % D == 0) else 1
    Dp = k * D

    B_pad = _round_up(B, k)
    if B_pad != B:
        x = jnp.pad(x, ((0, B_pad - B), (0, 0)))      # zero rows, sliced off after the kernel
    Bp = B_pad // k
    x_packed = x.reshape(Bp, Dp)

    # Lane-dense row-form weight: (k, k*D) block-"diagonal" rows; row j carries the (D,)
    # weight in lanes [j*D, (j+1)*D).  For k == 1 this is just the (1, D) row.
    w_row = weight.reshape(1, D).astype(dtype)
    if k == 1:
        w_rows = w_row
    else:
        eye = jnp.eye(k, dtype=dtype)
        w_rows = (eye[:, :, None] * w_row[0][None, None, :]).reshape(k, Dp)

    b1d = jnp.asarray(bias, jnp.float32).reshape(1)

    phys = _vmem_capacity_bytes()
    if tile_rows is None:
        tile_rows = _choose_tile_rows(Bp, Dp, itemsize, itemsize, phys)
    else:
        if tile_rows >= Bp:
            tile_rows = Bp
        else:
            tile_rows = max(128, _round_up(tile_rows, 128))   # lane-dense out blocks need %128
            if tile_rows >= Bp:
                tile_rows = Bp

    grid = (pl.cdiv(Bp, tile_rows),)

    # Explicit VMEM limit: double-buffered x + out + resident weight + slack, below physical.
    dp_pad = _round_up(Dp, 128)
    x_bytes = 2 * tile_rows * dp_pad * itemsize
    o_bytes = 2 * _round_up(k, 8) * _round_up(tile_rows, 128) * itemsize
    w_bytes = 2 * _round_up(k, 8) * dp_pad * itemsize
    vmem_limit = x_bytes + o_bytes + w_bytes + (4 << 20)
    vmem_limit = int(min(max(vmem_limit, 32 << 20), int(phys * 0.9)))

    out = pl.pallas_call(
        _poly_kernel,
        out_shape=jax.ShapeDtypeStruct((k, Bp), dtype),
        grid_spec=pl.GridSpec(
            grid=grid,
            in_specs=[
                # x: one packed batch tile per grid step (pipelined HBM->VMEM DMA)
                pl.BlockSpec((tile_rows, Dp), lambda i: (i, 0)),
                # weight: same block every step -> stays resident in VMEM
                pl.BlockSpec((k, Dp), lambda i: (0, 0)),
                # bias: whole (1,) array in SMEM, read as a scalar
                pl.BlockSpec(memory_space=pltpu.MemorySpace.SMEM),
            ],
            # output transposed: batch rows on the 128-lane axis -> unmasked vst
            out_specs=pl.BlockSpec((k, tile_rows), lambda i: (0, i)),
        ),
        compiler_params=pltpu.CompilerParams(
            dimension_semantics=("parallel",),
            vmem_limit_bytes=vmem_limit,
        ),
        cost_estimate=pl.CostEstimate(
            flops=2 * Bp * Dp * k,
            transcendentals=Bp * k,
            bytes_accessed=itemsize * (Bp * Dp + k * Dp + Bp * k),
        ),
    )(x_packed, w_rows, b1d)

    # out[j, i] = sigmoid(x[i*k + j] . w + b)  ->  flatten back to batch order, drop padding.
    y = out.T.reshape(B_pad)[:B]
    return jnp.squeeze(y)   # torch .squeeze(): (B,) -> 0-d scalar when B == 1


if __name__ == "__main__":
    key = jax.random.PRNGKey(0)

    # --- small config matching the module's forward (batch, input_dim); D < 128 packed path,
    #     batch not a multiple of k to exercise the pad-and-slice path ---
    batch, input_dim = 10, 32
    k_x, k_w, k_b = jax.random.split(key, 3)
    x = jax.random.normal(k_x, (batch, input_dim), dtype=jnp.float32)

    # Deterministic init mimicking nn.Linear default: U(-1/sqrt(D), 1/sqrt(D))
    bound = 1.0 / jnp.sqrt(jnp.float32(input_dim))
    weight = jax.random.uniform(k_w, (1, input_dim), jnp.float32, -bound, bound)
    bias = jax.random.uniform(k_b, (1,), jnp.float32, -bound, bound)

    y = jax.block_until_ready(polynomial_model_forward(x, weight, bias))
    y_ref = jax.nn.sigmoid(x @ weight.T + bias).squeeze()
    assert y.shape == (batch,)
    assert jnp.allclose(y, y_ref, atol=1e-6), (y, y_ref)

    # --- second check: multi-block pipelined path (grid > 1) on the D >= 128 branch ---
    batch2, input_dim2 = 1024, 128
    k_x2, k_w2, k_b2 = jax.random.split(jax.random.PRNGKey(1), 3)
    x2 = jax.random.normal(k_x2, (batch2, input_dim2), dtype=jnp.float32)
    bound2 = 1.0 / jnp.sqrt(jnp.float32(input_dim2))
    w2 = jax.random.uniform(k_w2, (1, input_dim2), jnp.float32, -bound2, bound2)
    b2 = jax.random.uniform(k_b2, (1,), jnp.float32, -bound2, bound2)

    y2 = jax.block_until_ready(
        polynomial_model_forward(x2, w2, b2, tile_rows=256)   # force grid=(4,)
    )
    y2_ref = jax.nn.sigmoid(x2 @ w2.T + b2).squeeze()
    assert y2.shape == (batch2,)
    assert jnp.allclose(y2, y2_ref, atol=1e-5), "tiled path mismatch"

    print("KERNEL_OK")
</pallas_src>

<mosaic_0001>
module attributes {stable_mosaic.version = 11 : i64} {
  func.func @_poly_kernel(%arg0: i32, %arg1: memref<3x128xf32, #tpu.memory_space<vmem>>, %arg2: memref<4x128xf32, #tpu.memory_space<vmem>>, %arg3: memref<1xf32, #tpu.memory_space<smem>>, %arg4: memref<4x3xf32, #tpu.memory_space<vmem>>) attributes {dimension_semantics = [#tpu.dimension_semantics<parallel>], iteration_bounds = array<i64: 1>, scalar_prefetch = 0 : i64, scratch_operands = 0 : i64, tpu.core_type = #tpu.core_type<tc>, window_params = [{transform_indices = @transform_0, window_bounds = array<i64: 3, 128>}, {pipeline_mode = #tpu.pipeline_mode<synchronous>, transform_indices = @transform_1, window_bounds = array<i64: 4, 128>}, {transform_indices = @transform_2, window_bounds = array<i64: 1>}, {transform_indices = @transform_3, window_bounds = array<i64: 4, 3>}]} {
    %c0 = arith.constant 0 : index
    %c0_0 = arith.constant 0 : index
    %0 = vector.load %arg2[%c0, %c0_0] : memref<4x128xf32, #tpu.memory_space<vmem>>, vector<4x128xf32>
    %c0_1 = arith.constant 0 : index
    %c0_2 = arith.constant 0 : index
    %1 = vector.load %arg1[%c0_1, %c0_2] : memref<3x128xf32, #tpu.memory_space<vmem>>, vector<3x128xf32>
    %cst = arith.constant dense<0.000000e+00> : vector<4x3xf32>
    %2 = tpu.matmul %0, %1, %cst {dimension_numbers = #tpu.dot_dimension_numbers<[1], [1], [0], [0], [0, 0, 1, 0], [], []>} : vector<4x128xf32>, vector<3x128xf32>, vector<4x3xf32> -> vector<4x3xf32>
    %c0_3 = arith.constant 0 : index
    %3 = memref.load %arg3[%c0_3] : memref<1xf32, #tpu.memory_space<smem>>
    %4 = vector.broadcast %3 : f32 to vector<4x3xf32>
    %5 = arith.addf %2, %4 : vector<4x3xf32>
    %6 = arith.negf %5 : vector<4x3xf32>
    %7 = math.exp %6 : vector<4x3xf32>
    %cst_4 = arith.constant 1.000000e+00 : f32
    %8 = vector.broadcast %cst_4 : f32 to vector<4x3xf32>
    %9 = arith.addf %8, %7 : vector<4x3xf32>
    %10 = arith.divf %8, %9 : vector<4x3xf32>
    %c0_5 = arith.constant 0 : index
    %c0_6 = arith.constant 0 : index
    %11 = vector.load %arg4[%c0_5, %c0_6] : memref<4x3xf32, #tpu.memory_space<vmem>>, vector<4x3xf32>
    tpu.vector_store %arg4[%c0_5, %c0_6], %10 {strides = array<i32>} : memref<4x3xf32, #tpu.memory_space<vmem>>, vector<4x3xf32>,
    return
  }
  func.func @transform_0(%arg0: i32) -> (i32, i32) {
    %c0_i32 = arith.constant 0 : i32
    %c0_i32_0 = arith.constant 0 : i32
    return %arg0, %c0_i32 : i32, i32
  }
  func.func @transform_1(%arg0: i32) -> (i32, i32) {
    %c0_i32 = arith.constant 0 : i32
    %c0_i32_0 = arith.constant 0 : i32
    %c0_i32_1 = arith.constant 0 : i32
    return %c0_i32, %c0_i32_0 : i32, i32
  }
  func.func @transform_2(%arg0: i32) -> i32 {
    %c0_i32 = arith.constant 0 : i32
    %c0_i32_0 = arith.constant 0 : i32
    return %c0_i32 : i32
  }
  func.func @transform_3(%arg0: i32) -> (i32, i32) {
    %c0_i32 = arith.constant 0 : i32
    %c0_i32_0 = arith.constant 0 : i32
    return %c0_i32, %arg0 : i32, i32
  }
}

</mosaic_0001>

<llo_original>
// kernel: tpu_custom_call.1
$region0: #{tpu_custom_call.1}
  #allocation0 [shape = 'u32[]', space=smem, size = 0x4, offset = 0x4, fixed_abs, tag = 'smem constant byte address 0x4 - core index']
  #allocation1 [shape = 'u32[144,128]{1,0:T(1,128)}', space=vmem, size = 0x12000, scoped, tag = 'internal scratch']
  #allocation2 [shape = 'f32[1]{0:T(128)S(6)}', space=smem, size = 0x200, scoped, tag = 'scoped memory for tpu_custom_call.1']
  %s0 = inlined_call_operand.hbm [shape: f32[3,128], index: 0, kind: input, shape index: {}]
  %s1 = inlined_call_operand.hbm [shape: f32[4,128], index: 1, kind: input, shape index: {}]
  %s2 = inlined_call_operand.<no memory space> [shape: f32[1], index: 2, kind: input, shape index: {}]
  %s3 = inlined_call_operand.hbm [shape: f32[4,3], index: 3, kind: output, shape index: {}]
  %s4 = sld [smem:[#allocation0]]
  $region30: #{tpu_custom_call.1} parent=0
    _
  %s6 = ssub.s32 1, %s4
  %s7 = scalar_select 0, %s6, %s4
  %8 = sst [smem:[#allocation2]] %s2
  $region1: #{tpu_custom_call.1} parent=0
    #allocation3 [shape = 'u8[2048]{0}', space=vmem, size = 0x800, scoped, tag = 'input window, operand 0, single buffered']
    #allocation4 [shape = 's32[1]{0}', space=sflag, size = 0x4, scoped, tag = 'scoped memory for tpu_custom_call.1']
    #allocation5 [shape = 's32[1]{0}', space=sflag, size = 0x4, scoped, tag = 'scoped memory for tpu_custom_call.1']
    #allocation6 [shape = 'u8[2048]{0}', space=vmem, size = 0x800, scoped, tag = 'input window, operand 1, single buffered']
    #allocation7 [shape = 's32[1]{0}', space=sflag, size = 0x4, scoped, tag = 'scoped memory for tpu_custom_call.1']
    #allocation8 [shape = 'u8[2048]{0}', space=vmem, size = 0x800, scoped, tag = 'output window, operand 0, single buffered']
    %9 = vsyncpa [#allocation4], 0
    %10 = vsyncpa [#allocation7], 0
    %11 = vsyncpa [#allocation5], 0
    // Predicated region
    $region2: #{tpu_custom_call.1} parent=1 // pred_check
      _
    $region3: #{tpu_custom_call.1} parent=1 // pred_check_branch
      %13 = sbr.rel (0) target = $region5
    $region4: #{tpu_custom_call.1} parent=1 // pred_region
      %s15 = ssub.s32 64, 64
      %16 = vsyncadd [#allocation4], %s15
      %s18 = sshll.u32 [#allocation3], 4
      %s19 = int_to_ptr.vmem [resolvable:$true] %s18
      %21 = dma.hbm_to_vmem [thread:$0]  %s0, 64, %s19, [#allocation4]
    $region5: #{tpu_custom_call.1} parent=1 // pred_fallthru
      _
    // Predicated region
    $region6: #{tpu_custom_call.1} parent=1 // pred_check
      _
    $region7: #{tpu_custom_call.1} parent=1 // pred_check_branch
      %23 = sbr.rel (0) target = $region9
    $region8: #{tpu_custom_call.1} parent=1 // pred_region
      %s25 = ssub.s32 64, 64
      %26 = vsyncadd [#allocation7], %s25
      %s28 = sshll.u32 [#allocation6], 4
      %s29 = int_to_ptr.vmem [resolvable:$true] %s28
      %31 = dma.hbm_to_vmem [thread:$0]  %s1, 64, %s29, [#allocation7]
    $region9: #{tpu_custom_call.1} parent=1 // pred_fallthru
      _
    // Predicated region
    $region10: #{tpu_custom_call.1} parent=1 // pred_check
      _
    $region11: #{tpu_custom_call.1} parent=1 // pred_check_branch
      %33 = sbr.rel (0) target = $region13
    $region12: #{tpu_custom_call.1} parent=1 // pred_region
      _
    $region13: #{tpu_custom_call.1} parent=1 // pred_fallthru
      _
    // Predicated region
    $region14: #{tpu_custom_call.1} parent=1 // pred_check
      _
    $region15: #{tpu_custom_call.1} parent=1 // pred_check_branch
      %35 = sbr.rel (0) target = $region17
    $region16: #{tpu_custom_call.1} parent=1 // pred_region
      %36 = dma.done [#allocation4], 64
    $region17: #{tpu_custom_call.1} parent=1 // pred_fallthru
      _
    // Predicated region
    $region18: #{tpu_custom_call.1} parent=1 // pred_check
      _
    $region19: #{tpu_custom_call.1} parent=1 // pred_check_branch
      %38 = sbr.rel (0) target = $region21
    $region20: #{tpu_custom_call.1} parent=1 // pred_region
      %39 = dma.done [#allocation7], 64
    $region21: #{tpu_custom_call.1} parent=1 // pred_fallthru
      _
    %v40 = vld [vmem:[#allocation6] sm:$0xf]
    %v41 = vld [vmem:[#allocation3] sm:$0x7]
    %s42 = sld [smem:[#allocation2]]
    %v43 = vstv %s42
    %44 = vmatprep.subr.mxu0 0.0
    %45 = vmatpush1.xpose.msra.mxu0 0.0
    %46 = vmatprep.subr.mxu0 0.0
    %47 = vmatpush1.xpose.msra.mxu0 0.0
    %48 = vmatprep.subr.mxu0 0.0
    %49 = vmatpush1.xpose.msra.mxu0 0.0
    %50 = vmatprep.subr.mxu0 0.0
    %51 = vmatpush1.xpose.msra.mxu0 0.0
    %52 = vmatprep.subr.mxu0 0.0
    %53 = vmatpush1.xpose.msra.mxu0 0.0
    %54 = vmatprep.subr.mxu0 0.0
    %55 = vmatpush1.xpose.msra.mxu0 0.0
    %56 = vmatprep.subr.mxu0 0.0
    %57 = vmatpush1.xpose.msra.mxu0 0.0
    %58 = vmatprep.subr.mxu0 0.0
    %59 = vmatpush1.xpose.msra.mxu0 0.0
    %60 = vmatprep.subr.mxu0 0.0
    %61 = vmatpush1.xpose.msra.mxu0 0.0
    %62 = vmatprep.subr.mxu0 0.0
    %63 = vmatpush1.xpose.msra.mxu0 0.0
    %64 = vmatprep.subr.mxu0 0.0
    %65 = vmatpush1.xpose.msra.mxu0 0.0
    %66 = vmatprep.subr.mxu0 0.0
    %67 = vmatpush1.xpose.msra.mxu0 0.0
    %68 = vmatprep.subr.mxu0 0.0
    %69 = vmatpush1.xpose.msra.mxu0 0.0
    %70 = vmatprep.subr.mxu0 0.0
    %71 = vmatpush1.xpose.msra.mxu0 0.0
    %72 = vmatprep.subr.mxu0 0.0
    %73 = vmatpush1.xpose.msra.mxu0 0.0
    %74 = vmatprep.subr.mxu0 0.0
    %75 = vmatpush1.xpose.msra.mxu0 %v41
    %76 = vmatprep.subr.mxu0 0.0
    %77 = vmatpush2.xpose.msra.mxu0 0.0
    %78 = vmatprep.subr.mxu0 0.0
    %79 = vmatpush2.xpose.msra.mxu0 0.0
    %80 = vmatprep.subr.mxu0 0.0
    %81 = vmatpush2.xpose.msra.mxu0 0.0
    %82 = vmatprep.subr.mxu0 0.0
    %83 = vmatpush2.xpose.msra.mxu0 0.0
    %84 = vmatprep.subr.mxu0 0.0
    %85 = vmatpush2.xpose.msra.mxu0 0.0
    %86 = vmatprep.subr.mxu0 0.0
    %87 = vmatpush2.xpose.msra.mxu0 0.0
    %88 = vmatprep.subr.mxu0 0.0
    %89 = vmatpush2.xpose.msra.mxu0 0.0
    %90 = vmatprep.subr.mxu0 0.0
    %91 = vmatpush2.xpose.msra.mxu0 0.0
    %92 = vmatprep.subr.mxu0 0.0
    %93 = vmatpush2.xpose.msra.mxu0 0.0
    %94 = vmatprep.subr.mxu0 0.0
    %95 = vmatpush2.xpose.msra.mxu0 0.0
    %96 = vmatprep.subr.mxu0 0.0
    %97 = vmatpush2.xpose.msra.mxu0 0.0
    %98 = vmatprep.subr.mxu0 0.0
    %99 = vmatpush2.xpose.msra.mxu0 0.0
    %100 = vmatprep.subr.mxu0 0.0
    %101 = vmatpush2.xpose.msra.mxu0 0.0
    %102 = vmatprep.subr.mxu0 0.0
    %103 = vmatpush2.xpose.msra.mxu0 0.0
    %104 = vmatprep.subr.mxu0 0.0
    %105 = vmatpush2.xpose.msra.mxu0 0.0
    %106 = vmatprep.subr.mxu0 0.0
    %107 = vmatpush2.xpose.msra.mxu0 0.0
    %108 = vmatprep.mubr.f32.mxu0 0.0
    %109 = vmatmul.mubr.f32.gmra.mxu0 %v40
    %v110 = vpop.f32.mrf.mxu0
    %v111 = vadd.f32 %v43, %v110
    %v112 = vpop.f32.mrf.mxu0
    %113 = vdwg.mxu0
    %v114 = vxor.u32 %v111, 2147483648
    %v115 = vmul.f32 %v114, 1.442695
    %v116 = vpow.pop %v115
    %v117 = vadd.f32 %v116, 1.0
    %v118 = vrcp.pop %v117
    %v119 = vmul.f32 1.0, %v118
    %vm120 = vcmask 19456
    %121 = vst.msk [vmem:[#allocation8] sm:$0xf] %vm120, %v119
    // Predicated region
    $region22: #{tpu_custom_call.1} parent=1 // pred_check
      _
    $region23: #{tpu_custom_call.1} parent=1 // pred_check_branch
      %123 = sbr.rel (0) target = $region25
    $region24: #{tpu_custom_call.1} parent=1 // pred_region
      %s125 = ssub.s32 64, 64
      %126 = vsyncadd [#allocation5], %s125
      %s128 = sshll.u32 [#allocation8], 4
      %s129 = int_to_ptr.vmem [resolvable:$true] %s128
      %131 = dma.vmem_to_hbm [thread:$0]  %s129, 64, %s3, [#allocation5]
    $region25: #{tpu_custom_call.1} parent=1 // pred_fallthru
      _
    // Predicated region
    $region26: #{tpu_custom_call.1} parent=1 // pred_check
      _
    $region27: #{tpu_custom_call.1} parent=1 // pred_check_branch
      %133 = sbr.rel (0) target = $region29
    $region28: #{tpu_custom_call.1} parent=1 // pred_region
      %134 = dma.done [#allocation5], 64
    $region29: #{tpu_custom_call.1} parent=1 // pred_fallthru
      _
    %135 = vsyncpa [#allocation4], 1
    %136 = vsyncpa [#allocation7], 1
    %137 = vsyncpa [#allocation5], 1

</llo_original>
